<compile_context>
chip_gen: v5e
topology: v5e:2x2
jax: 0.10.0
libtpu: 0.0.40
codegen_flags: <defaults>
</compile_context>

<pallas_src>
import functools

import jax
import jax.numpy as jnp
from jax.experimental import pallas as pl
from jax.experimental.pallas import tpu as pltpu


# ----------------------------------------------------------------------------
# einshape capability probe (runs one tiny kernel, memoized)
# ----------------------------------------------------------------------------
@functools.lru_cache(maxsize=None)
def _einshape_head_layout_ok() -> bool:
    """True iff pltpu.einshape supports the 'm(hd)->hmd' / 'hmd->m(hd)'
    head split/merge with the convention this kernel assumes."""
    if not hasattr(pltpu, "einshape"):
        return False
    H, M, DK = 4, 16, 8

    def probe(x_ref, split_ref, round_ref):
        th = pltpu.einshape("m(hd)->hmd", x_ref[...], h=H)
        split_ref[...] = th
        round_ref[...] = pltpu.einshape("hmd->m(hd)", th)

    try:
        x = jnp.arange(M * H * DK, dtype=jnp.float32).reshape(M, H * DK)
        split, rt = pl.pallas_call(
            probe,
            out_shape=(jax.ShapeDtypeStruct((H, M, DK), jnp.float32),
                       jax.ShapeDtypeStruct((M, H * DK), jnp.float32)),
        )(x)
        expected = jnp.transpose(x.reshape(M, H, DK), (1, 0, 2))
        return bool(jnp.allclose(split, expected)) and bool(jnp.allclose(rt, x))
    except Exception:   # missing symbol, equation parse error, lowering error
        return False


def _device_kind() -> str:
    try:
        return jax.devices()[0].device_kind.lower()
    except Exception:
        return ""


# ----------------------------------------------------------------------------
# Kernel
# ----------------------------------------------------------------------------
def _t5_block_kernel(x_ref, ln1_ref, wqkv_ref, wo_ref, ln2_ref, wi_ref,
                     wo_ff_ref, out_ref, *, n_heads, d_kv, d_ff, bb, S, D, eps,
                     use_einshape):
    inner = n_heads * d_kv
    f32 = jnp.float32
    cdt = jnp.bfloat16          # MXU operand dtype (fp32 accumulation)

    x = x_ref[0]                                              # (bb*S, D) f32

    def rms_norm(h, w_ref):
        # T5LayerNorm: RMS only, no mean subtraction, no bias (rsqrt -> EUP).
        var = jnp.mean(h * h, axis=-1, keepdims=True)
        return (h * jax.lax.rsqrt(var + eps)) * w_ref[...]

    def split_heads(t2d):
        # (bb*S, H*d_kv) -> (H*bb, S, d_kv).  Relayout in fp32 (native 8x128
        # tiles), one einshape (lane-aware reshape+transpose) per tensor; the
        # bb split afterwards is a free major-dim reshape.
        if use_einshape:
            th = pltpu.einshape("m(hd)->hmd", t2d, h=n_heads)  # (H, bb*S, dkv)
        else:
            # Fallback: H lane-window slices + one stack (proven lowering).
            th = jnp.stack(
                [t2d[:, h * d_kv:(h + 1) * d_kv] for h in range(n_heads)],
                axis=0)
        return th.reshape(n_heads * bb, S, d_kv).astype(cdt)

    def merge_heads(ctx_z):
        # (H*bb, S, d_kv) -> (bb*S, H*d_kv), head-major columns (W_o row order).
        ctx_h = ctx_z.reshape(n_heads, bb * S, d_kv)          # free major merge
        if use_einshape:
            return pltpu.einshape("hmd->m(hd)", ctx_h)
        return jnp.concatenate([ctx_h[h] for h in range(n_heads)], axis=-1)

    # ---------------- T5LayerSelfAttention ----------------
    normed = rms_norm(x, ln1_ref).astype(cdt)                 # (bb*S, D) bf16
    # Fused QKV projection: one (bb*S, D) x (D, 3*inner) bf16 MXU matmul.
    qkv = jnp.dot(normed, wqkv_ref[...], preferred_element_type=f32)

    qh = split_heads(qkv[:, :inner])                          # (H*bb, S, dkv)
    kh = split_heads(qkv[:, inner:2 * inner])
    vh = split_heads(qkv[:, 2 * inner:])

    # T5 attention: no 1/sqrt(d_kv) scaling; mask / position bias are None.
    scores = jnp.einsum('zqd,zkd->zqk', qh, kh,
                        preferred_element_type=f32)           # (Z, S, S) f32
    scores = scores - jnp.max(scores, axis=-1, keepdims=True)
    e = jnp.exp(scores)
    denom = jnp.sum(e, axis=-1, keepdims=True)
    # approx=True -> EUP vrcp (keeps the per-row normalization off the VALU).
    probs = (e * pl.reciprocal(denom, approx=True)).astype(cdt)
    ctx = jnp.einsum('zqk,zkd->zqd', probs, vh,
                     preferred_element_type=f32)              # (Z, S, dkv) f32

    ctx2d = merge_heads(ctx).astype(cdt)                      # (bb*S, inner)
    attn_out = jnp.dot(ctx2d, wo_ref[...], preferred_element_type=f32)
    y = x + attn_out                                          # residual, f32

    # ---------------- T5LayerFF (gated GELU, T5 v1.1) ----------------
    normed2 = rms_norm(y, ln2_ref).astype(cdt)
    # Fused Wi_0 | Wi_1: one (bb*S, D) x (D, 2*d_ff) bf16 matmul.
    hidden = jnp.dot(normed2, wi_ref[...], preferred_element_type=f32)
    h_gelu = jax.nn.gelu(hidden[:, :d_ff], approximate=True)  # gelu_new, f32
    ff_in = (h_gelu * hidden[:, d_ff:]).astype(cdt)
    ff = jnp.dot(ff_in, wo_ff_ref[...], preferred_element_type=f32)

    out_ref[0] = (y + ff).astype(out_ref.dtype)


# ----------------------------------------------------------------------------
# Wrapper
# ----------------------------------------------------------------------------
def _auto_num_blocks(B: int, S: int) -> int:
    """Batch-grid sizing.
    * Multi-step grid only when each step still keeps >= ~512 rows so the
      activation block DMA pipelines against compute without starving the
      MXU M dimension (v5e/v6e guidance).
    * v7x (2 TensorCores): split across cores only when each core gets
      >= 256 rows; smaller splits are overhead-dominated and duplicate the
      resident weights in both cores' 64 MiB VMEM.
    """
    min_rows_per_step = 512
    nb = 1
    for cand in range(1, B + 1):
        if B % cand == 0 and (B // cand) * S >= min_rows_per_step:
            nb = cand
    kind = _device_kind()
    if "v7" in kind and nb == 1 and B % 2 == 0 and (B * S) // 2 >= 256:
        nb = 2
    return nb


def _default_vmem_limit(bb, S, D, inner, d_ff, n_heads, kind) -> int:
    """Sum of resident buffers + 2x headroom, floored at 16 MiB and capped
    below physical VMEM (<= ~56 MiB on v7x)."""
    rows = bb * S
    f32, bf16 = 4, 2
    est = 0
    est += 2 * 2 * rows * D * f32                                  # x in/out, 2 bufs
    est += 2 * bf16 * (3 * D * inner + inner * D + 2 * D * d_ff + d_ff * D)  # weights
    est += 2 * 2 * D * f32                                         # LN weights
    est += rows * 3 * inner * f32                                  # fused qkv
    est += 3 * rows * inner * (f32 + bf16)                         # per-head q/k/v
    est += 2 * n_heads * bb * S * S * f32                          # scores + probs
    est += rows * inner * (f32 + bf16)                             # ctx
    est += rows * 2 * d_ff * f32 + rows * d_ff * (f32 + bf16)      # hidden, gated
    est += 4 * rows * D * f32                                      # normed / y / ff
    est = 2 * est + (4 << 20)                                      # headroom + slack
    cap = (56 << 20) if "v7" in kind else (100 << 20)
    return int(min(max(est, 16 << 20), cap))


def t5_block_ymt3_forward(x, params, *, n_heads, d_kv, eps=1e-6,
                          num_blocks=None, vmem_limit_bytes=None):
    """x: (B, S, D) float32. Returns (B, S, D) float32."""
    B, S, D = x.shape
    inner = n_heads * d_kv
    d_ff = params["wi0"].shape[1]

    if num_blocks is None:
        num_blocks = _auto_num_blocks(B, S)
    if B % num_blocks != 0:
        num_blocks = 1
    bb = B // num_blocks

    # Wrapper-side weight fusion + bf16 cast (free under jit, halves VMEM/HBM
    # traffic for weights): Wq|Wk|Wv -> (D, 3*inner), Wi_0|Wi_1 -> (D, 2*d_ff).
    cdt = jnp.bfloat16
    wqkv = jnp.concatenate([params["wq"], params["wk"], params["wv"]],
                           axis=1).astype(cdt)
    wi = jnp.concatenate([params["wi0"], params["wi1"]], axis=1).astype(cdt)
    wo = params["wo"].astype(cdt)
    wo_ff = params["wo_ff"].astype(cdt)
    ln1 = params["ln1"].reshape(1, D).astype(jnp.float32)
    ln2 = params["ln2"].reshape(1, D).astype(jnp.float32)

    # Fold (num_blocks, bb*S, D): per-step rows feed the matmul M dimension.
    x_blocked = x.reshape(num_blocks, bb * S, D)

    use_einshape = _einshape_head_layout_ok()

    if vmem_limit_bytes is None:
        vmem_limit_bytes = _default_vmem_limit(bb, S, D, inner, d_ff, n_heads,
                                               _device_kind())

    kernel = functools.partial(_t5_block_kernel, n_heads=n_heads, d_kv=d_kv,
                               d_ff=d_ff, bb=bb, S=S, D=D, eps=eps,
                               use_einshape=use_einshape)

    def wspec(shape):
        # Constant index_map: weights stay resident across all grid steps.
        # TODO(synk): single-buffer these (pl.Buffered(1) / ANY+manual copy)
        # for production sizes to halve resident weight VMEM.
        return pl.BlockSpec(shape, lambda i: tuple(0 for _ in shape))

    out = pl.pallas_call(
        kernel,
        out_shape=jax.ShapeDtypeStruct((num_blocks, bb * S, D), x.dtype),
        grid=(num_blocks,),
        in_specs=[
            pl.BlockSpec((1, bb * S, D), lambda i: (i, 0, 0)),  # hidden states
            wspec((1, D)),            # ln1 weight (fp32)
            wspec((D, 3 * inner)),    # fused Wq|Wk|Wv (bf16)
            wspec((inner, D)),        # Wo (attention, bf16)
            wspec((1, D)),            # ln2 weight (fp32)
            wspec((D, 2 * d_ff)),     # fused Wi_0|Wi_1 (bf16)
            wspec((d_ff, D)),         # Wo (FF, bf16)
        ],
        out_specs=pl.BlockSpec((1, bb * S, D), lambda i: (i, 0, 0)),
        compiler_params=pltpu.CompilerParams(
            dimension_semantics=("parallel",),
            vmem_limit_bytes=vmem_limit_bytes),
    )(x_blocked, ln1, wqkv, wo, ln2, wi, wo_ff)

    return out.reshape(B, S, D)


# ----------------------------------------------------------------------------
# Pure-JAX fp32 reference (mirrors the PyTorch T5BlockYMT3 encoder forward)
# ----------------------------------------------------------------------------
def t5_block_reference(x, params, *, n_heads, d_kv, eps=1e-6):
    def rms(h, w):
        v = jnp.mean(h * h, axis=-1, keepdims=True)
        return h * jax.lax.rsqrt(v + eps) * w

    B, S, D = x.shape
    normed = rms(x, params["ln1"])
    q = normed @ params["wq"]
    k = normed @ params["wk"]
    v = normed @ params["wv"]
    q = q.reshape(B, S, n_heads, d_kv).transpose(0, 2, 1, 3)
    k = k.reshape(B, S, n_heads, d_kv).transpose(0, 2, 1, 3)
    v = v.reshape(B, S, n_heads, d_kv).transpose(0, 2, 1, 3)
    scores = jnp.einsum("bhqd,bhkd->bhqk", q, k)        # no scaling (T5)
    probs = jax.nn.softmax(scores, axis=-1)
    ctx = jnp.einsum("bhqk,bhkd->bhqd", probs, v)
    ctx = ctx.transpose(0, 2, 1, 3).reshape(B, S, n_heads * d_kv)
    x = x + ctx @ params["wo"]

    normed2 = rms(x, params["ln2"])
    h = jax.nn.gelu(normed2 @ params["wi0"], approximate=True) * (normed2 @ params["wi1"])
    return x + h @ params["wo_ff"]


if __name__ == "__main__":
    # Small config consistent with T5: d_model=32, n_heads=4, d_kv=8, d_ff=64.
    # (Production shapes should use lane-aligned dims — multiples of 128.)
    B, S, D = 2, 8, 32
    H, DKV, DFF = 4, 8, 64
    inner = H * DKV

    key = jax.random.PRNGKey(0)
    ks = jax.random.split(key, 12)
    scale = 0.05
    params = {
        "ln1":   1.0 + 0.1 * jax.random.normal(ks[8], (D,), jnp.float32),
        "wq":    scale * jax.random.normal(ks[0], (D, inner), jnp.float32),
        "wk":    scale * jax.random.normal(ks[1], (D, inner), jnp.float32),
        "wv":    scale * jax.random.normal(ks[2], (D, inner), jnp.float32),
        "wo":    scale * jax.random.normal(ks[3], (inner, D), jnp.float32),
        "ln2":   1.0 + 0.1 * jax.random.normal(ks[9], (D,), jnp.float32),
        "wi0":   scale * jax.random.normal(ks[4], (D, DFF), jnp.float32),
        "wi1":   scale * jax.random.normal(ks[5], (D, DFF), jnp.float32),
        "wo_ff": scale * jax.random.normal(ks[6], (DFF, D), jnp.float32),
    }
    x = jax.random.normal(ks[7], (B, S, D), jnp.float32)

    fwd = jax.jit(functools.partial(t5_block_ymt3_forward, n_heads=H, d_kv=DKV))
    out = jax.block_until_ready(fwd(x, params))

    ref = t5_block_reference(x, params, n_heads=H, d_kv=DKV)
    assert out.shape == (B, S, D)
    # bf16 MXU operands with fp32 accumulation -> tolerance loosened vs fp32.
    assert jnp.allclose(out, ref, atol=2e-2, rtol=2e-2), \
        "mismatch vs fp32 reference (bf16 MXU path)"

    # TODO(synk): decoder path (cross-attention, past_key_value cache), 'moe'
    # FF variant, and fp16 clamp branches are not exercised in this synthetic
    # encoder/fp32/t5_gmlp configuration.
    print("KERNEL_OK")
</pallas_src>

<mosaic_0001>
module attributes {stable_mosaic.version = 11 : i64} {
  func.func @_t5_block_kernel(%arg0: i32, %arg1: memref<1x16x32xf32, #tpu.memory_space<vmem>>, %arg2: memref<1x32xf32, #tpu.memory_space<vmem>>, %arg3: memref<32x96xbf16, #tpu.memory_space<vmem>>, %arg4: memref<32x32xbf16, #tpu.memory_space<vmem>>, %arg5: memref<1x32xf32, #tpu.memory_space<vmem>>, %arg6: memref<32x128xbf16, #tpu.memory_space<vmem>>, %arg7: memref<64x32xbf16, #tpu.memory_space<vmem>>, %arg8: memref<1x16x32xf32, #tpu.memory_space<vmem>>) attributes {dimension_semantics = [#tpu.dimension_semantics<parallel>], iteration_bounds = array<i64: 1>, scalar_prefetch = 0 : i64, scratch_operands = 0 : i64, tpu.core_type = #tpu.core_type<tc>, window_params = [{transform_indices = @transform_0, window_bounds = array<i64: 1, 16, 32>}, {pipeline_mode = #tpu.pipeline_mode<synchronous>, transform_indices = @transform_1, window_bounds = array<i64: 1, 32>}, {pipeline_mode = #tpu.pipeline_mode<synchronous>, transform_indices = @transform_2, window_bounds = array<i64: 32, 96>}, {pipeline_mode = #tpu.pipeline_mode<synchronous>, transform_indices = @transform_3, window_bounds = array<i64: 32, 32>}, {pipeline_mode = #tpu.pipeline_mode<synchronous>, transform_indices = @transform_4, window_bounds = array<i64: 1, 32>}, {pipeline_mode = #tpu.pipeline_mode<synchronous>, transform_indices = @transform_5, window_bounds = array<i64: 32, 128>}, {pipeline_mode = #tpu.pipeline_mode<synchronous>, transform_indices = @transform_6, window_bounds = array<i64: 64, 32>}, {transform_indices = @transform_7, window_bounds = array<i64: 1, 16, 32>}]} {
    %c0 = arith.constant 0 : index
    %c0_0 = arith.constant 0 : index
    %c0_1 = arith.constant 0 : index
    %0 = vector.load %arg1[%c0, %c0_0, %c0_1] : memref<1x16x32xf32, #tpu.memory_space<vmem>>, vector<1x16x32xf32>
    %1 = vector.shape_cast %0 : vector<1x16x32xf32> to vector<16x32xf32>
    %2 = arith.mulf %1, %1 : vector<16x32xf32>
    %cst = arith.constant dense<0.000000e+00> : vector<16xf32>
    %3 = vector.multi_reduction <add>, %2, %cst [1] : vector<16x32xf32> to vector<16xf32>
    %4 = vector.shape_cast %3 : vector<16xf32> to vector<16x1xf32>
    %cst_2 = arith.constant 3.200000e+01 : f32
    %5 = vector.broadcast %cst_2 : f32 to vector<16x1xf32>
    %6 = arith.divf %4, %5 : vector<16x1xf32>
    %cst_3 = arith.constant 9.99999997E-7 : f32
    %7 = vector.broadcast %cst_3 : f32 to vector<16x1xf32>
    %8 = arith.addf %6, %7 : vector<16x1xf32>
    %9 = math.rsqrt %8 : vector<16x1xf32>
    %10 = vector.broadcast %9 : vector<16x1xf32> to vector<16x32xf32>
    %11 = arith.mulf %1, %10 : vector<16x32xf32>
    %c0_4 = arith.constant 0 : index
    %c0_5 = arith.constant 0 : index
    %12 = vector.load %arg2[%c0_4, %c0_5] : memref<1x32xf32, #tpu.memory_space<vmem>>, vector<1x32xf32>
    %13 = vector.broadcast %12 : vector<1x32xf32> to vector<16x32xf32>
    %14 = arith.mulf %11, %13 : vector<16x32xf32>
    %15 = arith.truncf %14 : vector<16x32xf32> to vector<16x32xbf16>
    %c0_6 = arith.constant 0 : index
    %c0_7 = arith.constant 0 : index
    %16 = vector.load %arg3[%c0_6, %c0_7] : memref<32x96xbf16, #tpu.memory_space<vmem>>, vector<32x96xbf16>
    %cst_8 = arith.constant dense<0.000000e+00> : vector<16x96xf32>
    %17 = tpu.matmul %15, %16, %cst_8 {dimension_numbers = #tpu.dot_dimension_numbers<[1], [0], [0], [1], [0, 0, 1, 1], [], []>} : vector<16x32xbf16>, vector<32x96xbf16>, vector<16x96xf32> -> vector<16x96xf32>
    %18 = vector.extract_strided_slice %17 {offsets = [0, 0], sizes = [16, 32], strides = [1, 1]} : vector<16x96xf32> to vector<16x32xf32>
    %19 = vector.extract_strided_slice %18 {offsets = [0, 0], sizes = [16, 8], strides = [1, 1]} : vector<16x32xf32> to vector<16x8xf32>
    %20 = vector.extract_strided_slice %18 {offsets = [0, 8], sizes = [16, 8], strides = [1, 1]} : vector<16x32xf32> to vector<16x8xf32>
    %21 = vector.extract_strided_slice %18 {offsets = [0, 16], sizes = [16, 8], strides = [1, 1]} : vector<16x32xf32> to vector<16x8xf32>
    %22 = vector.extract_strided_slice %18 {offsets = [0, 24], sizes = [16, 8], strides = [1, 1]} : vector<16x32xf32> to vector<16x8xf32>
    %23 = vector.shape_cast %19 : vector<16x8xf32> to vector<1x16x8xf32>
    %24 = vector.shape_cast %20 : vector<16x8xf32> to vector<1x16x8xf32>
    %25 = vector.shape_cast %21 : vector<16x8xf32> to vector<1x16x8xf32>
    %26 = vector.shape_cast %22 : vector<16x8xf32> to vector<1x16x8xf32>
    %27 = tpu.concatenate %23, %24, %25, %26 in 0 : vector<1x16x8xf32>, vector<1x16x8xf32>, vector<1x16x8xf32>, vector<1x16x8xf32> -> vector<4x16x8xf32>
    %28 = vector.shape_cast %27 : vector<4x16x8xf32> to vector<8x8x8xf32>
    %29 = arith.truncf %28 : vector<8x8x8xf32> to vector<8x8x8xbf16>
    %30 = vector.extract_strided_slice %17 {offsets = [0, 32], sizes = [16, 32], strides = [1, 1]} : vector<16x96xf32> to vector<16x32xf32>
    %31 = vector.extract_strided_slice %30 {offsets = [0, 0], sizes = [16, 8], strides = [1, 1]} : vector<16x32xf32> to vector<16x8xf32>
    %32 = vector.extract_strided_slice %30 {offsets = [0, 8], sizes = [16, 8], strides = [1, 1]} : vector<16x32xf32> to vector<16x8xf32>
    %33 = vector.extract_strided_slice %30 {offsets = [0, 16], sizes = [16, 8], strides = [1, 1]} : vector<16x32xf32> to vector<16x8xf32>
    %34 = vector.extract_strided_slice %30 {offsets = [0, 24], sizes = [16, 8], strides = [1, 1]} : vector<16x32xf32> to vector<16x8xf32>
    %35 = vector.shape_cast %31 : vector<16x8xf32> to vector<1x16x8xf32>
    %36 = vector.shape_cast %32 : vector<16x8xf32> to vector<1x16x8xf32>
    %37 = vector.shape_cast %33 : vector<16x8xf32> to vector<1x16x8xf32>
    %38 = vector.shape_cast %34 : vector<16x8xf32> to vector<1x16x8xf32>
    %39 = tpu.concatenate %35, %36, %37, %38 in 0 : vector<1x16x8xf32>, vector<1x16x8xf32>, vector<1x16x8xf32>, vector<1x16x8xf32> -> vector<4x16x8xf32>
    %40 = vector.shape_cast %39 : vector<4x16x8xf32> to vector<8x8x8xf32>
    %41 = arith.truncf %40 : vector<8x8x8xf32> to vector<8x8x8xbf16>
    %42 = vector.extract_strided_slice %17 {offsets = [0, 64], sizes = [16, 32], strides = [1, 1]} : vector<16x96xf32> to vector<16x32xf32>
    %43 = vector.extract_strided_slice %42 {offsets = [0, 0], sizes = [16, 8], strides = [1, 1]} : vector<16x32xf32> to vector<16x8xf32>
    %44 = vector.extract_strided_slice %42 {offsets = [0, 8], sizes = [16, 8], strides = [1, 1]} : vector<16x32xf32> to vector<16x8xf32>
    %45 = vector.extract_strided_slice %42 {offsets = [0, 16], sizes = [16, 8], strides = [1, 1]} : vector<16x32xf32> to vector<16x8xf32>
    %46 = vector.extract_strided_slice %42 {offsets = [0, 24], sizes = [16, 8], strides = [1, 1]} : vector<16x32xf32> to vector<16x8xf32>
    %47 = vector.shape_cast %43 : vector<16x8xf32> to vector<1x16x8xf32>
    %48 = vector.shape_cast %44 : vector<16x8xf32> to vector<1x16x8xf32>
    %49 = vector.shape_cast %45 : vector<16x8xf32> to vector<1x16x8xf32>
    %50 = vector.shape_cast %46 : vector<16x8xf32> to vector<1x16x8xf32>
    %51 = tpu.concatenate %47, %48, %49, %50 in 0 : vector<1x16x8xf32>, vector<1x16x8xf32>, vector<1x16x8xf32>, vector<1x16x8xf32> -> vector<4x16x8xf32>
    %52 = vector.shape_cast %51 : vector<4x16x8xf32> to vector<8x8x8xf32>
    %53 = arith.truncf %52 : vector<8x8x8xf32> to vector<8x8x8xbf16>
    "tpu.trace_start"() <{level = 10 : i32, message = "zqd,zkd->zqk"}> : () -> ()
    %cst_9 = arith.constant dense<0.000000e+00> : vector<8x8x8xf32>
    %54 = tpu.matmul %29, %41, %cst_9 {dimension_numbers = #tpu.dot_dimension_numbers<[2], [2], [1], [1], [0, 0, 0, 1, 1, 1], [0], [0]>} : vector<8x8x8xbf16>, vector<8x8x8xbf16>, vector<8x8x8xf32> -> vector<8x8x8xf32>
    "tpu.trace_stop"() : () -> ()
    %cst_10 = arith.constant dense<0xFF800000> : vector<8x8xf32>
    %55 = vector.multi_reduction <maximumf>, %54, %cst_10 [2] : vector<8x8x8xf32> to vector<8x8xf32>
    %56 = vector.shape_cast %55 : vector<8x8xf32> to vector<8x8x1xf32>
    %57 = vector.broadcast %56 : vector<8x8x1xf32> to vector<8x8x8xf32>
    %58 = arith.subf %54, %57 : vector<8x8x8xf32>
    %59 = math.exp %58 : vector<8x8x8xf32>
    %cst_11 = arith.constant dense<0.000000e+00> : vector<8x8xf32>
    %60 = vector.multi_reduction <add>, %59, %cst_11 [2] : vector<8x8x8xf32> to vector<8x8xf32>
    %61 = vector.shape_cast %60 : vector<8x8xf32> to vector<8x8x1xf32>
    %62 = tpu.reciprocal %61 {approx = true} : vector<8x8x1xf32> -> vector<8x8x1xf32>
    %63 = vector.broadcast %62 : vector<8x8x1xf32> to vector<8x8x8xf32>
    %64 = arith.mulf %59, %63 : vector<8x8x8xf32>
    %65 = arith.truncf %64 : vector<8x8x8xf32> to vector<8x8x8xbf16>
    "tpu.trace_start"() <{level = 10 : i32, message = "zqk,zkd->zqd"}> : () -> ()
    %cst_12 = arith.constant dense<0.000000e+00> : vector<8x8x8xf32>
    %66 = tpu.matmul %65, %53, %cst_12 {dimension_numbers = #tpu.dot_dimension_numbers<[2], [1], [1], [2], [0, 0, 0, 1, 1, 2], [0], [0]>} : vector<8x8x8xbf16>, vector<8x8x8xbf16>, vector<8x8x8xf32> -> vector<8x8x8xf32>
    "tpu.trace_stop"() : () -> ()
    %67 = vector.shape_cast %66 : vector<8x8x8xf32> to vector<4x16x8xf32>
    %68 = vector.extract_strided_slice %67 {offsets = [0, 0, 0], sizes = [1, 16, 8], strides = [1, 1, 1]} : vector<4x16x8xf32> to vector<1x16x8xf32>
    %69 = vector.shape_cast %68 : vector<1x16x8xf32> to vector<16x8xf32>
    %70 = vector.extract_strided_slice %67 {offsets = [1, 0, 0], sizes = [1, 16, 8], strides = [1, 1, 1]} : vector<4x16x8xf32> to vector<1x16x8xf32>
    %71 = vector.shape_cast %70 : vector<1x16x8xf32> to vector<16x8xf32>
    %72 = vector.extract_strided_slice %67 {offsets = [2, 0, 0], sizes = [1, 16, 8], strides = [1, 1, 1]} : vector<4x16x8xf32> to vector<1x16x8xf32>
    %73 = vector.shape_cast %72 : vector<1x16x8xf32> to vector<16x8xf32>
    %74 = vector.extract_strided_slice %67 {offsets = [3, 0, 0], sizes = [1, 16, 8], strides = [1, 1, 1]} : vector<4x16x8xf32> to vector<1x16x8xf32>
    %75 = vector.shape_cast %74 : vector<1x16x8xf32> to vector<16x8xf32>
    %76 = tpu.concatenate %69, %71, %73, %75 in 1 : vector<16x8xf32>, vector<16x8xf32>, vector<16x8xf32>, vector<16x8xf32> -> vector<16x32xf32>
    %77 = arith.truncf %76 : vector<16x32xf32> to vector<16x32xbf16>
    %c0_13 = arith.constant 0 : index
    %c0_14 = arith.constant 0 : index
    %78 = vector.load %arg4[%c0_13, %c0_14] : memref<32x32xbf16, #tpu.memory_space<vmem>>, vector<32x32xbf16>
    %cst_15 = arith.constant dense<0.000000e+00> : vector<16x32xf32>
    %79 = tpu.matmul %77, %78, %cst_15 {dimension_numbers = #tpu.dot_dimension_numbers<[1], [0], [0], [1], [0, 0, 1, 1], [], []>} : vector<16x32xbf16>, vector<32x32xbf16>, vector<16x32xf32> -> vector<16x32xf32>
    %80 = arith.addf %1, %79 : vector<16x32xf32>
    %81 = arith.mulf %80, %80 : vector<16x32xf32>
    %cst_16 = arith.constant dense<0.000000e+00> : vector<16xf32>
    %82 = vector.multi_reduction <add>, %81, %cst_16 [1] : vector<16x32xf32> to vector<16xf32>
    %83 = vector.shape_cast %82 : vector<16xf32> to vector<16x1xf32>
    %cst_17 = arith.constant 3.200000e+01 : f32
    %84 = vector.broadcast %cst_17 : f32 to vector<16x1xf32>
    %85 = arith.divf %83, %84 : vector<16x1xf32>
    %cst_18 = arith.constant 9.99999997E-7 : f32
    %86 = vector.broadcast %cst_18 : f32 to vector<16x1xf32>
    %87 = arith.addf %85, %86 : vector<16x1xf32>
    %88 = math.rsqrt %87 : vector<16x1xf32>
    %89 = vector.broadcast %88 : vector<16x1xf32> to vector<16x32xf32>
    %90 = arith.mulf %80, %89 : vector<16x32xf32>
    %c0_19 = arith.constant 0 : index
    %c0_20 = arith.constant 0 : index
    %91 = vector.load %arg5[%c0_19, %c0_20] : memref<1x32xf32, #tpu.memory_space<vmem>>, vector<1x32xf32>
    %92 = vector.broadcast %91 : vector<1x32xf32> to vector<16x32xf32>
    %93 = arith.mulf %90, %92 : vector<16x32xf32>
    %94 = arith.truncf %93 : vector<16x32xf32> to vector<16x32xbf16>
    %c0_21 = arith.constant 0 : index
    %c0_22 = arith.constant 0 : index
    %95 = vector.load %arg6[%c0_21, %c0_22] : memref<32x128xbf16, #tpu.memory_space<vmem>>, vector<32x128xbf16>
    %cst_23 = arith.constant dense<0.000000e+00> : vector<16x128xf32>
    %96 = tpu.matmul %94, %95, %cst_23 {dimension_numbers = #tpu.dot_dimension_numbers<[1], [0], [0], [1], [0, 0, 1, 1], [], []>} : vector<16x32xbf16>, vector<32x128xbf16>, vector<16x128xf32> -> vector<16x128xf32>
    %97 = vector.extract_strided_slice %96 {offsets = [0, 0], sizes = [16, 64], strides = [1, 1]} : vector<16x128xf32> to vector<16x64xf32>
    %98 = arith.mulf %97, %97 : vector<16x64xf32>
    %99 = arith.mulf %97, %98 : vector<16x64xf32>
    %cst_24 = arith.constant 4.471500e-02 : f32
    %100 = vector.broadcast %cst_24 : f32 to vector<16x64xf32>
    %101 = arith.mulf %100, %99 : vector<16x64xf32>
    %102 = arith.addf %97, %101 : vector<16x64xf32>
    %cst_25 = arith.constant 0.797884583 : f32
    %103 = vector.broadcast %cst_25 : f32 to vector<16x64xf32>
    %104 = arith.mulf %103, %102 : vector<16x64xf32>
    %105 = math.tanh %104 : vector<16x64xf32>
    %cst_26 = arith.constant 1.000000e+00 : f32
    %106 = vector.broadcast %cst_26 : f32 to vector<16x64xf32>
    %107 = arith.addf %106, %105 : vector<16x64xf32>
    %cst_27 = arith.constant 5.000000e-01 : f32
    %108 = vector.broadcast %cst_27 : f32 to vector<16x64xf32>
    %109 = arith.mulf %108, %107 : vector<16x64xf32>
    %110 = arith.mulf %97, %109 : vector<16x64xf32>
    %111 = vector.extract_strided_slice %96 {offsets = [0, 64], sizes = [16, 64], strides = [1, 1]} : vector<16x128xf32> to vector<16x64xf32>
    %112 = arith.mulf %110, %111 : vector<16x64xf32>
    %113 = arith.truncf %112 : vector<16x64xf32> to vector<16x64xbf16>
    %c0_28 = arith.constant 0 : index
    %c0_29 = arith.constant 0 : index
    %114 = vector.load %arg7[%c0_28, %c0_29] : memref<64x32xbf16, #tpu.memory_space<vmem>>, vector<64x32xbf16>
    %cst_30 = arith.constant dense<0.000000e+00> : vector<16x32xf32>
    %115 = tpu.matmul %113, %114, %cst_30 {dimension_numbers = #tpu.dot_dimension_numbers<[1], [0], [0], [1], [0, 0, 1, 1], [], []>} : vector<16x64xbf16>, vector<64x32xbf16>, vector<16x32xf32> -> vector<16x32xf32>
    %116 = arith.addf %80, %115 : vector<16x32xf32>
    %c0_31 = arith.constant 0 : index
    %c0_32 = arith.constant 0 : index
    %c0_33 = arith.constant 0 : index
    %117 = vector.load %arg8[%c0_31, %c0_32, %c0_33] : memref<1x16x32xf32, #tpu.memory_space<vmem>>, vector<1x16x32xf32>
    %118 = vector.shape_cast %117 : vector<1x16x32xf32> to vector<16x32xf32>
    %119 = vector.shape_cast %116 : vector<16x32xf32> to vector<1x16x32xf32>
    tpu.vector_store %arg8[%c0_31, %c0_32, %c0_33], %119 {strides = array<i32>} : memref<1x16x32xf32, #tpu.memory_space<vmem>>, vector<1x16x32xf32>,
    return
  }
  func.func @transform_0(%arg0: i32) -> (i32, i32, i32) {
    %c0_i32 = arith.constant 0 : i32
    %c0_i32_0 = arith.constant 0 : i32
    %c0_i32_1 = arith.constant 0 : i32
    return %arg0, %c0_i32, %c0_i32_0 : i32, i32, i32
  }
  func.func @transform_1(%arg0: i32) -> (i32, i32) {
    %c0_i32 = arith.constant 0 : i32
    %c0_i32_0 = arith.constant 0 : i32
    %c0_i32_1 = arith.constant 0 : i32
    return %c0_i32, %c0_i32_0 : i32, i32
  }
  func.func @transform_2(%arg0: i32) -> (i32, i32) {
    %c0_i32 = arith.constant 0 : i32
    %c0_i32_0 = arith.constant 0 : i32
    %c0_i32_1 = arith.constant 0 : i32
    return %c0_i32, %c0_i32_0 : i32, i32
  }
  func.func @transform_3(%arg0: i32) -> (i32, i32) {
    %c0_i32 = arith.constant 0 : i32
    %c0_i32_0 = arith.constant 0 : i32
    %c0_i32_1 = arith.constant 0 : i32
    return %c0_i32, %c0_i32_0 : i32, i32
  }
  func.func @transform_4(%arg0: i32) -> (i32, i32) {
    %c0_i32 = arith.constant 0 : i32
    %c0_i32_0 = arith.constant 0 : i32
    %c0_i32_1 = arith.constant 0 : i32
    return %c0_i32, %c0_i32_0 : i32, i32
  }
  func.func @transform_5(%arg0: i32) -> (i32, i32) {
    %c0_i32 = arith.constant 0 : i32
    %c0_i32_0 = arith.constant 0 : i32
    %c0_i32_1 = arith.constant 0 : i32
    return %c0_i32, %c0_i32_0 : i32, i32
  }
  func.func @transform_6(%arg0: i32) -> (i32, i32) {
    %c0_i32 = arith.constant 0 : i32
    %c0_i32_0 = arith.constant 0 : i32
    %c0_i32_1 = arith.constant 0 : i32
    return %c0_i32, %c0_i32_0 : i32, i32
  }
  func.func @transform_7(%arg0: i32) -> (i32, i32, i32) {
    %c0_i32 = arith.constant 0 : i32
    %c0_i32_0 = arith.constant 0 : i32
    %c0_i32_1 = arith.constant 0 : i32
    return %arg0, %c0_i32, %c0_i32_0 : i32, i32, i32
  }
}

</mosaic_0001>

<llo_original>
// kernel: t5_block_ymt3_forward.1
$region0: #{t5_block_ymt3_forward.1}
  #allocation0 [shape = 'u32[]', space=smem, size = 0x4, offset = 0x4, fixed_abs, tag = 'smem constant byte address 0x4 - core index']
  #allocation1 [shape = 'u32[72,128]{1,0:T(1,128)}', space=vmem, size = 0x9000, scoped, tag = 'internal scratch']
  %s0 = inlined_call_operand.vmem [shape: f32[1,16,32], index: 0, kind: input, shape index: {}]
  %s1 = inlined_call_operand.vmem [shape: f32[1,32], index: 1, kind: input, shape index: {}]
  %s2 = inlined_call_operand.vmem [shape: bf16[32,96], index: 2, kind: input, shape index: {}]
  %s3 = inlined_call_operand.vmem [shape: bf16[32,32], index: 3, kind: input, shape index: {}]
  %s4 = inlined_call_operand.vmem [shape: f32[1,32], index: 4, kind: input, shape index: {}]
  %s5 = inlined_call_operand.vmem [shape: bf16[32,128], index: 5, kind: input, shape index: {}]
  %s6 = inlined_call_operand.vmem [shape: bf16[64,32], index: 6, kind: input, shape index: {}]
  %s7 = inlined_call_operand.hbm [shape: f32[1,16,32], index: 7, kind: output, shape index: {}]
  %s8 = sld [smem:[#allocation0]]
  $region38: #{t5_block_ymt3_forward.1} parent=0
    _
  %s10 = ssub.s32 1, %s8
  %s11 = scalar_select 0, %s10, %s8
  $region1: #{t5_block_ymt3_forward.1} parent=0
    #allocation2 [shape = 'u8[8192]{0}', space=vmem, size = 0x2000, scoped, tag = 'output window, operand 0, single buffered']
    #allocation3 [shape = 's32[1]{0}', space=sflag, size = 0x4, scoped, tag = 'scoped memory for t5_block_ymt3_forward.1']
    %12 = vsyncpa [#allocation3], 0
    // Predicated region
    $region2: #{t5_block_ymt3_forward.1} parent=1 // pred_check
      _
    $region3: #{t5_block_ymt3_forward.1} parent=1 // pred_check_branch
      %14 = sbr.rel (0) target = $region5
    $region4: #{t5_block_ymt3_forward.1} parent=1 // pred_region
      _
    $region5: #{t5_block_ymt3_forward.1} parent=1 // pred_fallthru
      _
    // Predicated region
    $region6: #{t5_block_ymt3_forward.1} parent=1 // pred_check
      _
    $region7: #{t5_block_ymt3_forward.1} parent=1 // pred_check_branch
      %16 = sbr.rel (0) target = $region9
    $region8: #{t5_block_ymt3_forward.1} parent=1 // pred_region
      _
    $region9: #{t5_block_ymt3_forward.1} parent=1 // pred_fallthru
      _
    // Predicated region
    $region10: #{t5_block_ymt3_forward.1} parent=1 // pred_check
      _
    $region11: #{t5_block_ymt3_forward.1} parent=1 // pred_check_branch
      %18 = sbr.rel (0) target = $region13
    $region12: #{t5_block_ymt3_forward.1} parent=1 // pred_region
      _
    $region13: #{t5_block_ymt3_forward.1} parent=1 // pred_fallthru
      _
    // Predicated region
    $region14: #{t5_block_ymt3_forward.1} parent=1 // pred_check
      _
    $region15: #{t5_block_ymt3_forward.1} parent=1 // pred_check_branch
      %20 = sbr.rel (0) target = $region17
    $region16: #{t5_block_ymt3_forward.1} parent=1 // pred_region
      _
    $region17: #{t5_block_ymt3_forward.1} parent=1 // pred_fallthru
      _
    // Predicated region
    $region18: #{t5_block_ymt3_forward.1} parent=1 // pred_check
      _
    $region19: #{t5_block_ymt3_forward.1} parent=1 // pred_check_branch
      %22 = sbr.rel (0) target = $region21
    $region20: #{t5_block_ymt3_forward.1} parent=1 // pred_region
      _
    $region21: #{t5_block_ymt3_forward.1} parent=1 // pred_fallthru
      _
    // Predicated region
    $region22: #{t5_block_ymt3_forward.1} parent=1 // pred_check
      _
    $region23: #{t5_block_ymt3_forward.1} parent=1 // pred_check_branch
      %24 = sbr.rel (0) target = $region25
    $region24: #{t5_block_ymt3_forward.1} parent=1 // pred_region
      _
    $region25: #{t5_block_ymt3_forward.1} parent=1 // pred_fallthru
      _
    // Predicated region
    $region26: #{t5_block_ymt3_forward.1} parent=1 // pred_check
      _
    $region27: #{t5_block_ymt3_forward.1} parent=1 // pred_check_branch
      %26 = sbr.rel (0) target = $region29
    $region28: #{t5_block_ymt3_forward.1} parent=1 // pred_region
      _
    $region29: #{t5_block_ymt3_forward.1} parent=1 // pred_fallthru
      _
    %v28 = vld [vmem:[%s0] sm:$0xff]
    %v29 = vld [vmem:[%s0 + $0x8] sm:$0xff]
    %v30 = vmul.f32 %v28, %v28
    %v31 = vmul.f32 %v29, %v29
    %vm32 = vcmask 261120
    %v33 = vsel %vm32, %v30, 0.0
    %34 = vadd.xlane.f32.xlu0 %v33
    %v35 = vpop.xlane.xlu0 %34
    %v36 = vsel %vm32, %v31, 0.0
    %37 = vadd.xlane.f32.xlu0 %v36
    %v38 = vpop.xlane.xlu0 %37
    %v39 = vrcp.pop 32.0
    %v40 = vmul.f32 32.0, %v39
    %v41 = vsub.f32 1.0, %v40
    %v42 = vmul.f32 %v39, %v41
    %v43 = vadd.f32 %v39, %v42
    %vm44 = vweird.f32 %v39
    %v45 = vsel %vm44, %v39, %v43
    %v46 = vmul.f32 %v35, %v45
    %v47 = vmul.f32 %v38, %v45
    %v48 = vadd.f32 %v46, 1e-06
    %v49 = vadd.f32 %v47, 1e-06
    %v50 = vrsqrt.pop %v48
    %v51 = vmul.f32 %v50, %v48
    %v52 = vmul.f32 %v51, %v50
    %v53 = vmul.f32 0.5, %v52
    %v54 = vsub.f32 1.5, %v53
    %v55 = vmul.f32 %v50, %v54
    %vm56 = vweird.f32 %v48
    %vm57 = vweird.f32 %v50
    %vm58 = vmor %vm56, %vm57
    %v59 = vsel %vm58, %v50, %v55
    %v60 = vrsqrt.pop %v49
    %v61 = vmul.f32 %v60, %v49
    %v62 = vmul.f32 %v61, %v60
    %v63 = vmul.f32 0.5, %v62
    %v64 = vsub.f32 1.5, %v63
    %v65 = vmul.f32 %v60, %v64
    %vm66 = vweird.f32 %v49
    %vm67 = vweird.f32 %v60
    %vm68 = vmor %vm66, %vm67
    %v69 = vsel %vm68, %v60, %v65
    %v70 = vmul.f32 %v28, %v59
    %v71 = vmul.f32 %v29, %v69
    %v72 = vld [vmem:[%s1] sm:$0x1]
    %v74 = vperm.slane %v72, 0
    %v76 = vmul.f32 %v70, %v74
    %v77 = vmul.f32 %v71, %v74
    %v78 = vpack.c.bf16 %v77, %v76
    %v79 = vld [vmem:[%s2] sm:$0xf]
    %v80 = vld [vmem:[%s2 + $0x4] sm:$0xf]
    %v81 = vld [vmem:[%s2 + $0x8] sm:$0xf]
    %v82 = vld [vmem:[%s2 + $0xc] sm:$0xf]
    %v87 = vunpack.c.l.b16 %v79
    %v88 = vunpack.c.l.b16 %v80
    %v89 = vunpack.c.l.b16 %v81
    %v90 = vunpack.c.l.b16 %v82
    %v91 = vpack.c.b16 %v88, %v87
    %v92 = vpack.c.b16 %v90, %v89
    %v96 = vsel %vm32, %v78, 0
    %98 = vmatpush.bf16.msra.mxu0 0
    %99 = vmatpush.bf16.msra.mxu0 0
    %100 = vmatpush.bf16.msra.mxu0 0
    %101 = vmatpush.bf16.msra.mxu0 0
    %102 = vmatpush.bf16.msra.mxu0 0
    %103 = vmatpush.bf16.msra.mxu0 0
    %104 = vmatpush.bf16.msra.mxu0 %v92
    %105 = vmatpush.bf16.msra.mxu0 %v91
    %106 = vmatmul.bf16.gmra.mxu0 %v96
    %v107 = vpop.f32.mrf.mxu0
    %v108 = vadd.f32 0.0, %v107
    %v109 = vpop.f32.mrf.mxu0
    %v110 = vadd.f32 0.0, %v109
    %111 = vdwg.mxu0
    %114 = vrot.lane.b32.xlu0 %v108, 120
    %v115 = vpop.permute.xlu0 %114
    %116 = vrot.lane.b32.xlu0 %v110, 120
    %v117 = vpop.permute.xlu0 %116
    %120 = vrot.lane.b32.xlu0 %v108, 112
    %v121 = vpop.permute.xlu0 %120
    %122 = vrot.lane.b32.xlu0 %v110, 112
    %v123 = vpop.permute.xlu0 %122
    %126 = vrot.lane.b32.xlu0 %v108, 104
    %v127 = vpop.permute.xlu0 %126
    %128 = vrot.lane.b32.xlu0 %v110, 104
    %v129 = vpop.permute.xlu0 %128
    %v132 = vpack.c.bf16 %v108, %v108
    %v133 = vpack.c.bf16 %v110, %v110
    %v134 = vpack.c.bf16 %v115, %v115
    %v135 = vpack.c.bf16 %v117, %v117
    %v136 = vpack.c.bf16 %v121, %v121
    %v137 = vpack.c.bf16 %v123, %v123
    %v138 = vpack.c.bf16 %v127, %v127
    %v139 = vpack.c.bf16 %v129, %v129
    %v141 = vunpack.c.l.b16 %v132
    %v142 = vpack.c.b16 %v141, %v141
    %143 = vrot.lane.b32.xlu0 %v142, 96
    %v144 = vpop.permute.xlu0 %143
    %vm145 = vcmask 64512
    %v147 = vsel %vm145, %v132, 0
    %v150 = vsel %vm145, %v144, 0
    %152 = vmatpush.bf16.xpose.msra.mxu0 0
    %153 = vmatpush.bf16.xpose.msra.mxu0 0
    %154 = vmatpush.bf16.xpose.msra.mxu0 0
    %155 = vmatpush.bf16.xpose.msra.mxu0 0
    %156 = vmatpush.bf16.xpose.msra.mxu0 0
    %157 = vmatpush.bf16.xpose.msra.mxu0 0
    %158 = vmatpush.bf16.xpose.msra.mxu0 0
    %159 = vmatpush.bf16.xpose.msra.mxu0 %v150
    %160 = vmatmul.bf16.gmra.mxu0 %v147
    %v161 = vpop.f32.mrf.mxu0
    %v162 = vadd.f32 0.0, %v161
    %v163 = vpop.f32.mrf.mxu0
    %164 = vdwg.mxu0
    %v166 = vunpack.c.l.b16 %v133
    %v167 = vpack.c.b16 %v166, %v166
    %168 = vrot.lane.b32.xlu0 %v167, 96
    %v169 = vpop.permute.xlu0 %168
    %v171 = vsel %vm145, %v133, 0
    %v174 = vsel %vm145, %v169, 0
    %176 = vmatpush.bf16.xpose.msra.mxu0 0
    %177 = vmatpush.bf16.xpose.msra.mxu0 0
    %178 = vmatpush.bf16.xpose.msra.mxu0 0
    %179 = vmatpush.bf16.xpose.msra.mxu0 0
    %180 = vmatpush.bf16.xpose.msra.mxu0 0
    %181 = vmatpush.bf16.xpose.msra.mxu0 0
    %182 = vmatpush.bf16.xpose.msra.mxu0 0
    %183 = vmatpush.bf16.xpose.msra.mxu0 %v174
    %184 = vmatmul.bf16.gmra.mxu0 %v171
    %v185 = vpop.f32.mrf.mxu0
    %v186 = vadd.f32 0.0, %v185
    %v187 = vpop.f32.mrf.mxu0
    %188 = vdwg.mxu0
    %v190 = vunpack.c.l.b16 %v134
    %v191 = vpack.c.b16 %v190, %v190
    %192 = vrot.lane.b32.xlu0 %v191, 96
    %v193 = vpop.permute.xlu0 %192
    %v195 = vsel %vm145, %v134, 0
    %v198 = vsel %vm145, %v193, 0
    %200 = vmatpush.bf16.xpose.msra.mxu0 0
    %201 = vmatpush.bf16.xpose.msra.mxu0 0
    %202 = vmatpush.bf16.xpose.msra.mxu0 0
    %203 = vmatpush.bf16.xpose.msra.mxu0 0
    %204 = vmatpush.bf16.xpose.msra.mxu0 0
    %205 = vmatpush.bf16.xpose.msra.mxu0 0
    %206 = vmatpush.bf16.xpose.msra.mxu0 0
    %207 = vmatpush.bf16.xpose.msra.mxu0 %v198
    %208 = vmatmul.bf16.gmra.mxu0 %v195
    %v209 = vpop.f32.mrf.mxu0
    %v210 = vadd.f32 0.0, %v209
    %v211 = vpop.f32.mrf.mxu0
    %212 = vdwg.mxu0
    %v214 = vunpack.c.l.b16 %v135
    %v215 = vpack.c.b16 %v214, %v214
    %216 = vrot.lane.b32.xlu0 %v215, 96
    %v217 = vpop.permute.xlu0 %216
    %v219 = vsel %vm145, %v135, 0
    %v222 = vsel %vm145, %v217, 0
    %224 = vmatpush.bf16.xpose.msra.mxu0 0
    %225 = vmatpush.bf16.xpose.msra.mxu0 0
    %226 = vmatpush.bf16.xpose.msra.mxu0 0
    %227 = vmatpush.bf16.xpose.msra.mxu0 0
    %228 = vmatpush.bf16.xpose.msra.mxu0 0
    %229 = vmatpush.bf16.xpose.msra.mxu0 0
    %230 = vmatpush.bf16.xpose.msra.mxu0 0
    %231 = vmatpush.bf16.xpose.msra.mxu0 %v222
    %232 = vmatmul.bf16.gmra.mxu0 %v219
    %v233 = vpop.f32.mrf.mxu0
    %v234 = vadd.f32 0.0, %v233
    %v235 = vpop.f32.mrf.mxu0
    %236 = vdwg.mxu0
    %v238 = vunpack.c.l.b16 %v136
    %v239 = vpack.c.b16 %v238, %v238
    %240 = vrot.lane.b32.xlu0 %v239, 96
    %v241 = vpop.permute.xlu0 %240
    %v243 = vsel %vm145, %v136, 0
    %v246 = vsel %vm145, %v241, 0
    %248 = vmatpush.bf16.xpose.msra.mxu0 0
    %249 = vmatpush.bf16.xpose.msra.mxu0 0
    %250 = vmatpush.bf16.xpose.msra.mxu0 0
    %251 = vmatpush.bf16.xpose.msra.mxu0 0
    %252 = vmatpush.bf16.xpose.msra.mxu0 0
    %253 = vmatpush.bf16.xpose.msra.mxu0 0
    %254 = vmatpush.bf16.xpose.msra.mxu0 0
    %255 = vmatpush.bf16.xpose.msra.mxu0 %v246
    %256 = vmatmul.bf16.gmra.mxu0 %v243
    %v257 = vpop.f32.mrf.mxu0
    %v258 = vadd.f32 0.0, %v257
    %v259 = vpop.f32.mrf.mxu0
    %260 = vdwg.mxu0
    %v262 = vunpack.c.l.b16 %v137
    %v263 = vpack.c.b16 %v262, %v262
    %264 = vrot.lane.b32.xlu0 %v263, 96
    %v265 = vpop.permute.xlu0 %264
    %v267 = vsel %vm145, %v137, 0
    %v270 = vsel %vm145, %v265, 0
    %272 = vmatpush.bf16.xpose.msra.mxu0 0
    %273 = vmatpush.bf16.xpose.msra.mxu0 0
    %274 = vmatpush.bf16.xpose.msra.mxu0 0
    %275 = vmatpush.bf16.xpose.msra.mxu0 0
    %276 = vmatpush.bf16.xpose.msra.mxu0 0
    %277 = vmatpush.bf16.xpose.msra.mxu0 0
    %278 = vmatpush.bf16.xpose.msra.mxu0 0
    %279 = vmatpush.bf16.xpose.msra.mxu0 %v270
    %280 = vmatmul.bf16.gmra.mxu0 %v267
    %v281 = vpop.f32.mrf.mxu0
    %v282 = vadd.f32 0.0, %v281
    %v283 = vpop.f32.mrf.mxu0
    %284 = vdwg.mxu0
    %v286 = vunpack.c.l.b16 %v138
    %v287 = vpack.c.b16 %v286, %v286
    %288 = vrot.lane.b32.xlu0 %v287, 96
    %v289 = vpop.permute.xlu0 %288
    %v291 = vsel %vm145, %v138, 0
    %v294 = vsel %vm145, %v289, 0
    %296 = vmatpush.bf16.xpose.msra.mxu0 0
    %297 = vmatpush.bf16.xpose.msra.mxu0 0
    %298 = vmatpush.bf16.xpose.msra.mxu0 0
    %299 = vmatpush.bf16.xpose.msra.mxu0 0
    %300 = vmatpush.bf16.xpose.msra.mxu0 0
    %301 = vmatpush.bf16.xpose.msra.mxu0 0
    %302 = vmatpush.bf16.xpose.msra.mxu0 0
    %303 = vmatpush.bf16.xpose.msra.mxu0 %v294
    %304 = vmatmul.bf16.gmra.mxu0 %v291
    %v305 = vpop.f32.mrf.mxu0
    %v306 = vadd.f32 0.0, %v305
    %v307 = vpop.f32.mrf.mxu0
    %308 = vdwg.mxu0
    %v310 = vunpack.c.l.b16 %v139
    %v311 = vpack.c.b16 %v310, %v310
    %312 = vrot.lane.b32.xlu0 %v311, 96
    %v313 = vpop.permute.xlu0 %312
    %v315 = vsel %vm145, %v139, 0
    %v318 = vsel %vm145, %v313, 0
    %320 = vmatpush.bf16.xpose.msra.mxu0 0
    %321 = vmatpush.bf16.xpose.msra.mxu0 0
    %322 = vmatpush.bf16.xpose.msra.mxu0 0
    %323 = vmatpush.bf16.xpose.msra.mxu0 0
    %324 = vmatpush.bf16.xpose.msra.mxu0 0
    %325 = vmatpush.bf16.xpose.msra.mxu0 0
    %326 = vmatpush.bf16.xpose.msra.mxu0 0
    %327 = vmatpush.bf16.xpose.msra.mxu0 %v318
    %328 = vmatmul.bf16.gmra.mxu0 %v315
    %v329 = vpop.f32.mrf.mxu0
    %v330 = vadd.f32 0.0, %v329
    %v331 = vpop.f32.mrf.mxu0
    %332 = vdwg.mxu0
    %v333 = vsel %vm145, %v162, -inf
    %334 = vmax.xlane.f32.xlu0 %v333
    %v335 = vpop.xlane.xlu0 %334
    %v336 = vsel %vm145, %v186, -inf
    %337 = vmax.xlane.f32.xlu0 %v336
    %v338 = vpop.xlane.xlu0 %337
    %v339 = vsel %vm145, %v210, -inf
    %340 = vmax.xlane.f32.xlu0 %v339
    %v341 = vpop.xlane.xlu0 %340
    %v342 = vsel %vm145, %v234, -inf
    %343 = vmax.xlane.f32.xlu0 %v342
    %v344 = vpop.xlane.xlu0 %343
    %v345 = vsel %vm145, %v258, -inf
    %346 = vmax.xlane.f32.xlu0 %v345
    %v347 = vpop.xlane.xlu0 %346
    %v348 = vsel %vm145, %v282, -inf
    %349 = vmax.xlane.f32.xlu0 %v348
    %v350 = vpop.xlane.xlu0 %349
    %v351 = vsel %vm145, %v306, -inf
    %352 = vmax.xlane.f32.xlu0 %v351
    %v353 = vpop.xlane.xlu0 %352
    %v354 = vsel %vm145, %v330, -inf
    %355 = vmax.xlane.f32.xlu0 %v354
    %v356 = vpop.xlane.xlu0 %355
    %v357 = vsub.f32 %v162, %v335
    %v358 = vsub.f32 %v186, %v338
    %v359 = vsub.f32 %v210, %v341
    %v360 = vsub.f32 %v234, %v344
    %v361 = vsub.f32 %v258, %v347
    %v362 = vsub.f32 %v282, %v350
    %v363 = vsub.f32 %v306, %v353
    %v364 = vsub.f32 %v330, %v356
    %v365 = vmul.f32 %v357, 1.442695
    %v366 = vpow.pop %v365
    %v367 = vmul.f32 %v358, 1.442695
    %v368 = vpow.pop %v367
    %v369 = vmul.f32 %v359, 1.442695
    %v370 = vpow.pop %v369
    %v371 = vmul.f32 %v360, 1.442695
    %v372 = vpow.pop %v371
    %v373 = vmul.f32 %v361, 1.442695
    %v374 = vpow.pop %v373
    %v375 = vmul.f32 %v362, 1.442695
    %v376 = vpow.pop %v375
    %v377 = vmul.f32 %v363, 1.442695
    %v378 = vpow.pop %v377
    %v379 = vmul.f32 %v364, 1.442695
    %v380 = vpow.pop %v379
    %v381 = vsel %vm145, %v366, 0.0
    %382 = vadd.xlane.f32.xlu0 %v381
    %v383 = vpop.xlane.xlu0 %382
    %v384 = vsel %vm145, %v368, 0.0
    %385 = vadd.xlane.f32.xlu0 %v384
    %v386 = vpop.xlane.xlu0 %385
    %v387 = vsel %vm145, %v370, 0.0
    %388 = vadd.xlane.f32.xlu0 %v387
    %v389 = vpop.xlane.xlu0 %388
    %v390 = vsel %vm145, %v372, 0.0
    %391 = vadd.xlane.f32.xlu0 %v390
    %v392 = vpop.xlane.xlu0 %391
    %v393 = vsel %vm145, %v374, 0.0
    %394 = vadd.xlane.f32.xlu0 %v393
    %v395 = vpop.xlane.xlu0 %394
    %v396 = vsel %vm145, %v376, 0.0
    %397 = vadd.xlane.f32.xlu0 %v396
    %v398 = vpop.xlane.xlu0 %397
    %v399 = vsel %vm145, %v378, 0.0
    %400 = vadd.xlane.f32.xlu0 %v399
    %v401 = vpop.xlane.xlu0 %400
    %v402 = vsel %vm145, %v380, 0.0
    %403 = vadd.xlane.f32.xlu0 %v402
    %v404 = vpop.xlane.xlu0 %403
    %v405 = vrcp.pop %v383
    %v406 = vrcp.pop %v386
    %v407 = vrcp.pop %v389
    %v408 = vrcp.pop %v392
    %v409 = vrcp.pop %v395
    %v410 = vrcp.pop %v398
    %v411 = vrcp.pop %v401
    %v412 = vrcp.pop %v404
    %v413 = vmul.f32 %v366, %v405
    %v414 = vmul.f32 %v368, %v406
    %v415 = vmul.f32 %v370, %v407
    %v416 = vmul.f32 %v372, %v408
    %v417 = vmul.f32 %v374, %v409
    %v418 = vmul.f32 %v376, %v410
    %v419 = vmul.f32 %v378, %v411
    %v420 = vmul.f32 %v380, %v412
    %v421 = vpack.c.bf16 %v413, %v413
    %v422 = vpack.c.bf16 %v414, %v414
    %v423 = vpack.c.bf16 %v415, %v415
    %v424 = vpack.c.bf16 %v416, %v416
    %v425 = vpack.c.bf16 %v417, %v417
    %v426 = vpack.c.bf16 %v418, %v418
    %v427 = vpack.c.bf16 %v419, %v419
    %v428 = vpack.c.bf16 %v420, %v420
    %429 = vrot.lane.b32.xlu0 %v142, 64
    %v430 = vpop.permute.xlu0 %429
    %v432 = vsel %vm145, %v421, 0
    %vm434 = vcmask 1043456
    %v436 = vsel %vm434, %v430, 0
    %438 = vmatpush.bf16.msra.mxu0 0
    %439 = vmatpush.bf16.msra.mxu0 0
    %440 = vmatpush.bf16.msra.mxu0 0
    %441 = vmatpush.bf16.msra.mxu0 0
    %442 = vmatpush.bf16.msra.mxu0 0
    %443 = vmatpush.bf16.msra.mxu0 0
    %444 = vmatpush.bf16.msra.mxu0 0
    %445 = vmatpush.bf16.msra.mxu0 %v436
    %446 = vmatmul.bf16.gmra.mxu0 %v432
    %v447 = vpop.f32.mrf.mxu0
    %v448 = vadd.f32 0.0, %v447
    %v449 = vpop.f32.mrf.mxu0
    %450 = vdwg.mxu0
    %451 = vrot.lane.b32.xlu0 %v167, 64
    %v452 = vpop.permute.xlu0 %451
    %v454 = vsel %vm145, %v422, 0
    %v457 = vsel %vm434, %v452, 0
    %459 = vmatpush.bf16.msra.mxu0 0
    %460 = vmatpush.bf16.msra.mxu0 0
    %461 = vmatpush.bf16.msra.mxu0 0
    %462 = vmatpush.bf16.msra.mxu0 0
    %463 = vmatpush.bf16.msra.mxu0 0
    %464 = vmatpush.bf16.msra.mxu0 0
    %465 = vmatpush.bf16.msra.mxu0 0
    %466 = vmatpush.bf16.msra.mxu0 %v457
    %467 = vmatmul.bf16.gmra.mxu0 %v454
    %v468 = vpop.f32.mrf.mxu0
    %v469 = vadd.f32 0.0, %v468
    %v470 = vpop.f32.mrf.mxu0
    %471 = vdwg.mxu0
    %472 = vrot.lane.b32.xlu0 %v191, 64
    %v473 = vpop.permute.xlu0 %472
    %v475 = vsel %vm145, %v423, 0
    %v478 = vsel %vm434, %v473, 0
    %480 = vmatpush.bf16.msra.mxu0 0
    %481 = vmatpush.bf16.msra.mxu0 0
    %482 = vmatpush.bf16.msra.mxu0 0
    %483 = vmatpush.bf16.msra.mxu0 0
    %484 = vmatpush.bf16.msra.mxu0 0
    %485 = vmatpush.bf16.msra.mxu0 0
    %486 = vmatpush.bf16.msra.mxu0 0
    %487 = vmatpush.bf16.msra.mxu0 %v478
    %488 = vmatmul.bf16.gmra.mxu0 %v475
    %v489 = vpop.f32.mrf.mxu0
    %v490 = vadd.f32 0.0, %v489
    %v491 = vpop.f32.mrf.mxu0
    %492 = vdwg.mxu0
    %493 = vrot.lane.b32.xlu0 %v215, 64
    %v494 = vpop.permute.xlu0 %493
    %v496 = vsel %vm145, %v424, 0
    %v499 = vsel %vm434, %v494, 0
    %501 = vmatpush.bf16.msra.mxu0 0
    %502 = vmatpush.bf16.msra.mxu0 0
    %503 = vmatpush.bf16.msra.mxu0 0
    %504 = vmatpush.bf16.msra.mxu0 0
    %505 = vmatpush.bf16.msra.mxu0 0
    %506 = vmatpush.bf16.msra.mxu0 0
    %507 = vmatpush.bf16.msra.mxu0 0
    %508 = vmatpush.bf16.msra.mxu0 %v499
    %509 = vmatmul.bf16.gmra.mxu0 %v496
    %v510 = vpop.f32.mrf.mxu0
    %v511 = vadd.f32 0.0, %v510
    %v512 = vpop.f32.mrf.mxu0
    %513 = vdwg.mxu0
    %514 = vrot.lane.b32.xlu0 %v239, 64
    %v515 = vpop.permute.xlu0 %514
    %v517 = vsel %vm145, %v425, 0
    %v520 = vsel %vm434, %v515, 0
    %522 = vmatpush.bf16.msra.mxu0 0
    %523 = vmatpush.bf16.msra.mxu0 0
    %524 = vmatpush.bf16.msra.mxu0 0
    %525 = vmatpush.bf16.msra.mxu0 0
    %526 = vmatpush.bf16.msra.mxu0 0
    %527 = vmatpush.bf16.msra.mxu0 0
    %528 = vmatpush.bf16.msra.mxu0 0
    %529 = vmatpush.bf16.msra.mxu0 %v520
    %530 = vmatmul.bf16.gmra.mxu0 %v517
    %v531 = vpop.f32.mrf.mxu0
    %v532 = vadd.f32 0.0, %v531
    %v533 = vpop.f32.mrf.mxu0
    %534 = vdwg.mxu0
    %535 = vrot.lane.b32.xlu0 %v263, 64
    %v536 = vpop.permute.xlu0 %535
    %v538 = vsel %vm145, %v426, 0
    %v541 = vsel %vm434, %v536, 0
    %543 = vmatpush.bf16.msra.mxu0 0
    %544 = vmatpush.bf16.msra.mxu0 0
    %545 = vmatpush.bf16.msra.mxu0 0
    %546 = vmatpush.bf16.msra.mxu0 0
    %547 = vmatpush.bf16.msra.mxu0 0
    %548 = vmatpush.bf16.msra.mxu0 0
    %549 = vmatpush.bf16.msra.mxu0 0
    %550 = vmatpush.bf16.msra.mxu0 %v541
    %551 = vmatmul.bf16.gmra.mxu0 %v538
    %v552 = vpop.f32.mrf.mxu0
    %v553 = vadd.f32 0.0, %v552
    %v554 = vpop.f32.mrf.mxu0
    %555 = vdwg.mxu0
    %556 = vrot.lane.b32.xlu0 %v287, 64
    %v557 = vpop.permute.xlu0 %556
    %v559 = vsel %vm145, %v427, 0
    %v562 = vsel %vm434, %v557, 0
    %564 = vmatpush.bf16.msra.mxu0 0
    %565 = vmatpush.bf16.msra.mxu0 0
    %566 = vmatpush.bf16.msra.mxu0 0
    %567 = vmatpush.bf16.msra.mxu0 0
    %568 = vmatpush.bf16.msra.mxu0 0
    %569 = vmatpush.bf16.msra.mxu0 0
    %570 = vmatpush.bf16.msra.mxu0 0
    %571 = vmatpush.bf16.msra.mxu0 %v562
    %572 = vmatmul.bf16.gmra.mxu0 %v559
    %v573 = vpop.f32.mrf.mxu0
    %v574 = vadd.f32 0.0, %v573
    %v575 = vpop.f32.mrf.mxu0
    %576 = vdwg.mxu0
    %577 = vrot.lane.b32.xlu0 %v311, 64
    %v578 = vpop.permute.xlu0 %577
    %v580 = vsel %vm145, %v428, 0
    %v583 = vsel %vm434, %v578, 0
    %585 = vmatpush.bf16.msra.mxu0 0
    %586 = vmatpush.bf16.msra.mxu0 0
    %587 = vmatpush.bf16.msra.mxu0 0
    %588 = vmatpush.bf16.msra.mxu0 0
    %589 = vmatpush.bf16.msra.mxu0 0
    %590 = vmatpush.bf16.msra.mxu0 0
    %591 = vmatpush.bf16.msra.mxu0 0
    %592 = vmatpush.bf16.msra.mxu0 %v583
    %593 = vmatmul.bf16.gmra.mxu0 %v580
    %v594 = vpop.f32.mrf.mxu0
    %v595 = vadd.f32 0.0, %v594
    %v596 = vpop.f32.mrf.mxu0
    %597 = vdwg.mxu0
    %600 = vrot.lane.b32.xlu0 %v490, 8
    %v601 = vpop.permute.xlu0 %600
    %602 = vrot.lane.b32.xlu0 %v511, 8
    %v603 = vpop.permute.xlu0 %602
    %608 = vrot.lane.b32.xlu0 %v532, 16
    %v609 = vpop.permute.xlu0 %608
    %610 = vrot.lane.b32.xlu0 %v553, 16
    %v611 = vpop.permute.xlu0 %610
    %616 = vrot.lane.b32.xlu0 %v574, 24
    %v617 = vpop.permute.xlu0 %616
    %618 = vrot.lane.b32.xlu0 %v595, 24
    %v619 = vpop.permute.xlu0 %618
    %v622 = vsel %vm145, %v448, %v601
    %v623 = vsel %vm145, %v469, %v603
    %vm624 = vcmask 130048
    %v625 = vsel %vm624, %v622, %v609
    %v626 = vsel %vm624, %v623, %v611
    %vm627 = vcmask 195584
    %v628 = vsel %vm627, %v625, %v617
    %v629 = vsel %vm627, %v626, %v619
    %v630 = vpack.c.bf16 %v629, %v628
    %v631 = vld [vmem:[%s3] sm:$0xf]
    %v632 = vld [vmem:[%s3 + $0x4] sm:$0xf]
    %v633 = vld [vmem:[%s3 + $0x8] sm:$0xf]
    %v634 = vld [vmem:[%s3 + $0xc] sm:$0xf]
    %v639 = vunpack.c.l.b16 %v631
    %v640 = vunpack.c.l.b16 %v632
    %v641 = vunpack.c.l.b16 %v633
    %v642 = vunpack.c.l.b16 %v634
    %v643 = vpack.c.b16 %v640, %v639
    %v644 = vpack.c.b16 %v642, %v641
    %v648 = vsel %vm32, %v630, 0
    %650 = vmatpush.bf16.msra.mxu0 0
    %651 = vmatpush.bf16.msra.mxu0 0
    %652 = vmatpush.bf16.msra.mxu0 0
    %653 = vmatpush.bf16.msra.mxu0 0
    %654 = vmatpush.bf16.msra.mxu0 0
    %655 = vmatpush.bf16.msra.mxu0 0
    %656 = vmatpush.bf16.msra.mxu0 %v644
    %657 = vmatpush.bf16.msra.mxu0 %v643
    %658 = vmatmul.bf16.gmra.mxu0 %v648
    %v659 = vpop.f32.mrf.mxu0
    %v660 = vadd.f32 0.0, %v659
    %v661 = vpop.f32.mrf.mxu0
    %v662 = vadd.f32 0.0, %v661
    %663 = vdwg.mxu0
    %v664 = vadd.f32 %v28, %v660
    %v665 = vadd.f32 %v29, %v662
    %v666 = vmul.f32 %v664, %v664
    %v667 = vmul.f32 %v665, %v665
    %v668 = vsel %vm32, %v666, 0.0
    %669 = vadd.xlane.f32.xlu0 %v668
    %v670 = vpop.xlane.xlu0 %669
    %v671 = vsel %vm32, %v667, 0.0
    %672 = vadd.xlane.f32.xlu0 %v671
    %v673 = vpop.xlane.xlu0 %672
    %v674 = vmul.f32 %v670, %v45
    %v675 = vmul.f32 %v673, %v45
    %v676 = vadd.f32 %v674, 1e-06
    %v677 = vadd.f32 %v675, 1e-06
    %v678 = vrsqrt.pop %v676
    %v679 = vmul.f32 %v678, %v676
    %v680 = vmul.f32 %v679, %v678
    %v681 = vmul.f32 0.5, %v680
    %v682 = vsub.f32 1.5, %v681
    %v683 = vmul.f32 %v678, %v682
    %vm684 = vweird.f32 %v676
    %vm685 = vweird.f32 %v678
    %vm686 = vmor %vm684, %vm685
    %v687 = vsel %vm686, %v678, %v683
    %v688 = vrsqrt.pop %v677
    %v689 = vmul.f32 %v688, %v677
    %v690 = vmul.f32 %v689, %v688
    %v691 = vmul.f32 0.5, %v690
    %v692 = vsub.f32 1.5, %v691
    %v693 = vmul.f32 %v688, %v692
    %vm694 = vweird.f32 %v677
    %vm695 = vweird.f32 %v688
    %vm696 = vmor %vm694, %vm695
    %v697 = vsel %vm696, %v688, %v693
    %v698 = vmul.f32 %v664, %v687
    %v699 = vmul.f32 %v665, %v697
    %v700 = vld [vmem:[%s4] sm:$0x1]
    %v702 = vperm.slane %v700, 0
    %v704 = vmul.f32 %v698, %v702
    %v705 = vmul.f32 %v699, %v702
    %v706 = vpack.c.bf16 %v705, %v704
    %v707 = vld [vmem:[%s5] sm:$0xf]
    %v708 = vld [vmem:[%s5 + $0x4] sm:$0xf]
    %v709 = vld [vmem:[%s5 + $0x8] sm:$0xf]
    %v710 = vld [vmem:[%s5 + $0xc] sm:$0xf]
    %v715 = vunpack.c.l.b16 %v707
    %v716 = vunpack.c.l.b16 %v708
    %v717 = vunpack.c.l.b16 %v709
    %v718 = vunpack.c.l.b16 %v710
    %v719 = vpack.c.b16 %v716, %v715
    %v720 = vpack.c.b16 %v718, %v717
    %v724 = vsel %vm32, %v706, 0
    %726 = vmatpush.bf16.msra.mxu0 0
    %727 = vmatpush.bf16.msra.mxu0 0
    %728 = vmatpush.bf16.msra.mxu0 0
    %729 = vmatpush.bf16.msra.mxu0 0
    %730 = vmatpush.bf16.msra.mxu0 0
    %731 = vmatpush.bf16.msra.mxu0 0
    %732 = vmatpush.bf16.msra.mxu0 %v720
    %733 = vmatpush.bf16.msra.mxu0 %v719
    %734 = vmatmul.bf16.gmra.mxu0 %v724
    %v735 = vpop.f32.mrf.mxu0
    %v736 = vadd.f32 0.0, %v735
    %v737 = vpop.f32.mrf.mxu0
    %v738 = vadd.f32 0.0, %v737
    %739 = vdwg.mxu0
    %v740 = vmul.f32 %v736, %v736
    %v741 = vmul.f32 %v738, %v738
    %v742 = vmul.f32 %v736, %v740
    %v743 = vmul.f32 %v738, %v741
    %v744 = vmul.f32 %v742, 0.044715
    %v745 = vmul.f32 %v743, 0.044715
    %v746 = vadd.f32 %v736, %v744
    %v747 = vadd.f32 %v738, %v745
    %v748 = vmul.f32 %v746, 0.7978846
    %v749 = vmul.f32 %v747, 0.7978846
    %v750 = vtanh.pop %v748
    %v751 = vtanh.pop %v749
    %v752 = vadd.f32 %v750, 1.0
    %v753 = vadd.f32 %v751, 1.0
    %v754 = vmul.f32 %v752, 0.5
    %v755 = vmul.f32 %v753, 0.5
    %v756 = vmul.f32 %v736, %v754
    %v757 = vmul.f32 %v738, %v755
    %760 = vrot.lane.b32.xlu0 %v736, 64
    %v761 = vpop.permute.xlu0 %760
    %762 = vrot.lane.b32.xlu0 %v738, 64
    %v763 = vpop.permute.xlu0 %762
    %v766 = vmul.f32 %v756, %v761
    %v767 = vmul.f32 %v757, %v763
    %v768 = vpack.c.bf16 %v767, %v766
    %v769 = vld [vmem:[%s6] sm:$0xf]
    %v770 = vld [vmem:[%s6 + $0x4] sm:$0xf]
    %v771 = vld [vmem:[%s6 + $0x8] sm:$0xf]
    %v772 = vld [vmem:[%s6 + $0xc] sm:$0xf]
    %v773 = vld [vmem:[%s6 + $0x10] sm:$0xf]
    %v774 = vld [vmem:[%s6 + $0x14] sm:$0xf]
    %v775 = vld [vmem:[%s6 + $0x18] sm:$0xf]
    %v776 = vld [vmem:[%s6 + $0x1c] sm:$0xf]
    %v785 = vunpack.c.l.b16 %v769
    %v786 = vunpack.c.l.b16 %v770
    %v787 = vunpack.c.l.b16 %v771
    %v788 = vunpack.c.l.b16 %v772
    %v789 = vunpack.c.l.b16 %v773
    %v790 = vunpack.c.l.b16 %v774
    %v791 = vunpack.c.l.b16 %v775
    %v792 = vunpack.c.l.b16 %v776
    %v793 = vpack.c.b16 %v786, %v785
    %v794 = vpack.c.b16 %v788, %v787
    %v795 = vpack.c.b16 %v790, %v789
    %v796 = vpack.c.b16 %v792, %v791
    %vm801 = vcmask 523264
    %v803 = vsel %vm801, %v768, 0
    %805 = vmatpush.bf16.msra.mxu0 0
    %806 = vmatpush.bf16.msra.mxu0 0
    %807 = vmatpush.bf16.msra.mxu0 0
    %808 = vmatpush.bf16.msra.mxu0 0
    %809 = vmatpush.bf16.msra.mxu0 %v796
    %810 = vmatpush.bf16.msra.mxu0 %v795
    %811 = vmatpush.bf16.msra.mxu0 %v794
    %812 = vmatpush.bf16.msra.mxu0 %v793
    %813 = vmatmul.bf16.gmra.mxu0 %v803
    %v814 = vpop.f32.mrf.mxu0
    %v815 = vadd.f32 0.0, %v814
    %v816 = vpop.f32.mrf.mxu0
    %v817 = vadd.f32 0.0, %v816
    %818 = vdwg.mxu0
    %v819 = vadd.f32 %v664, %v815
    %v820 = vadd.f32 %v665, %v817
    %821 = vst.msk [vmem:[#allocation2] sm:$0xff] %vm32, %v819
    %822 = vst.msk [vmem:[#allocation2 + $0x8] sm:$0xff] %vm32, %v820
    // Predicated region
    $region30: #{t5_block_ymt3_forward.1} parent=1 // pred_check
      _
    $region31: #{t5_block_ymt3_forward.1} parent=1 // pred_check_branch
      %824 = sbr.rel (0) target = $region33
    $region32: #{t5_block_ymt3_forward.1} parent=1 // pred_region
      %826 = vsyncadd [#allocation3], 0
      %s827 = sshll.u32 [#allocation2], 4
      %s828 = int_to_ptr.vmem [resolvable:$true] %s827
      %s829 = sshll.u32 %s7, 4
      %s830 = int_to_ptr.hbm [resolvable:$true] %s829
      %835 = dma.vmem_to_hbm [thread:$0]  %s828, 256, %s830, [#allocation3], 128, 128, 8
    $region33: #{t5_block_ymt3_forward.1} parent=1 // pred_fallthru
      _
    // Predicated region
    $region34: #{t5_block_ymt3_forward.1} parent=1 // pred_check
      _
    $region35: #{t5_block_ymt3_forward.1} parent=1 // pred_check_branch
      %837 = sbr.rel (0) target = $region37
    $region36: #{t5_block_ymt3_forward.1} parent=1 // pred_region
      %839 = dma.done [#allocation3], 256
    $region37: #{t5_block_ymt3_forward.1} parent=1 // pred_fallthru
      _
    %840 = vsyncpa [#allocation3], 1

</llo_original>
